<compile_context>
chip_gen: v7x
topology: tpu7x:2x2x1
jax: 0.10.0
libtpu: 0.0.40
codegen_flags: <defaults>
</compile_context>

<pallas_src>
import functools

import jax
import jax.numpy as jnp
from jax.experimental import pallas as pl
from jax.experimental.pallas import tpu as pltpu


def _round_up(x, m):
    return ((x + m - 1) // m) * m


def _conv3x3_lrelu_kernel(xa_ref, xb_ref, col_ref, w_ref, b_ref, o_ref, *,
                          img_w, tile_q, neg_slope):
    """One (batch, spatial-tile) step: 3x3 / stride-1 / zero-pad-1 conv + LeakyReLU.

    xa_ref:  [Cin, TQ]      flat-spatial tile j of the H-padded input
    xb_ref:  [Cin, TQ]      flat-spatial tile j+1 (halo for the stencil)
    col_ref: [1, TQ]        image-column index of every output lane (int32)
    w_ref:   [9, Cout, Cin] conv weights, tap-major
    b_ref:   [Cout, 1]      bias
    o_ref:   [Cout, TQ]     flat-spatial output tile (spatial on lanes)
    """
    cout = b_ref.shape[0]

    # Current tile plus its halo so every shifted tap stays in VMEM.
    xcat = jnp.concatenate([xa_ref[...], xb_ref[...]], axis=1)   # [Cin, 2*TQ]

    # Masks killing the wrap-around contribution of the left/right taps at the
    # image borders (top/bottom borders are handled by the zero pad rows).
    col = col_ref[...]                                           # [1, TQ]
    mask_l = col > 0
    mask_r = col < (img_w - 1)

    # Bias folded into the accumulator init; accumulate the 9 taps as small
    # MXU matmuls contracting over Cin (f32 accumulation).
    acc = jnp.broadcast_to(b_ref[...].astype(jnp.float32), (cout, tile_q))
    for kh in range(3):
        for kw in range(3):
            shift = (kh + 1) * img_w + (kw - 1)        # >= img_w - 1 >= 0
            xs = xcat[:, shift:shift + tile_q]         # [Cin, TQ] tap view
            if kw == 0:
                xs = jnp.where(mask_l, xs, 0)
            elif kw == 2:
                xs = jnp.where(mask_r, xs, 0)
            acc = acc + jnp.dot(w_ref[kh * 3 + kw], xs,
                                preferred_element_type=jnp.float32)

    y = jnp.where(acc > 0, acc, neg_slope * acc)       # LeakyReLU(0.2)
    o_ref[...] = y.astype(o_ref.dtype)


def conv2d_layer_forward(x, weight, bias, *, neg_slope=0.2, target_tile=512,
                         compute_dtype=None):
    """Conv2dLayer forward (zero-pad 3x3 conv, stride 1, + LeakyReLU(0.2)).

    x:      [N, Cin, H, W]    (NCHW, PyTorch convention)
    weight: [Cout, Cin, 3, 3]
    bias:   [Cout]
    returns [N, Cout, H, W]
    """
    n, cin, h, w = x.shape
    cout, wcin, kh_, kw_ = weight.shape
    assert (wcin, kh_, kw_) == (cin, 3, 3), "kernel specialized to 3x3 conv"

    m = h * w                                    # output positions per image
    # Lane-dense spatial tile: multiple of 128 and at least one full stencil
    # halo (3*W + 2 flat positions) so tile j plus tile j+1 covers every tap.
    tq = _round_up(max(min(target_tile, m), 3 * w + 2), 128)
    nj = pl.cdiv(m, tq)

    # Zero-pad H: 2 rows on top (makes every tap a non-negative flat shift),
    # enough rows at the bottom that blocks j and j+1 are always fully
    # in-bounds.  Then flatten spatial.  This is the only extra HBM pass over
    # the input -- no im2col patch matrix is ever materialized.
    flat_len = (nj + 1) * tq
    rows = pl.cdiv(flat_len, w)
    pad_bot = max(rows - h - 2, 2)
    xp = jnp.pad(x, ((0, 0), (0, 0), (2, pad_bot), (0, 0)))
    xf = xp.reshape(n, cin, (h + 2 + pad_bot) * w)

    # Tap-major weights: w9[kh*3+kw, co, ci] = weight[co, ci, kh, kw].
    w9 = jnp.transpose(weight, (2, 3, 0, 1)).reshape(9, cout, cin)
    b2 = bias.reshape(cout, 1).astype(jnp.float32)
    # Image-column index of every flat output position (for border masking).
    col_ids = (jnp.arange(nj * tq, dtype=jnp.int32) % w).reshape(1, nj * tq)

    if compute_dtype is not None:
        xf = xf.astype(compute_dtype)
        w9 = w9.astype(compute_dtype)

    # Output flat length: exact (partial last block is masked by Pallas) unless
    # the image is smaller than one tile, in which case pad and slice after.
    m_out = tq if tq > m else m

    kernel = functools.partial(_conv3x3_lrelu_kernel, img_w=w, tile_q=tq,
                               neg_slope=neg_slope)
    out_flat = pl.pallas_call(
        kernel,
        out_shape=jax.ShapeDtypeStruct((n, cout, m_out), x.dtype),
        grid=(n, nj),
        in_specs=[
            pl.BlockSpec((None, cin, tq), lambda ni, j: (ni, 0, j)),      # tile j
            pl.BlockSpec((None, cin, tq), lambda ni, j: (ni, 0, j + 1)),  # halo tile
            pl.BlockSpec((1, tq), lambda ni, j: (0, j)),                  # col ids
            pl.BlockSpec((9, cout, cin), lambda ni, j: (0, 0, 0)),        # weights
            pl.BlockSpec((cout, 1), lambda ni, j: (0, 0)),                # bias
        ],
        out_specs=pl.BlockSpec((None, cout, tq), lambda ni, j: (ni, 0, j)),
        compiler_params=pltpu.CompilerParams(
            dimension_semantics=("parallel", "parallel"),
            vmem_limit_bytes=32 << 20),
    )(xf, xf, col_ids, w9, b2)

    if m_out != m:
        out_flat = out_flat[:, :, :m]
    # [N, Cout, H*W] -> NCHW is a free (contiguous) reshape.
    return out_flat.reshape(n, cout, h, w)


def _reference_forward(x, weight, bias, *, neg_slope=0.2):
    """Pure-JAX reference (lax conv) for correctness checking."""
    out = jax.lax.conv_general_dilated(
        x, weight, window_strides=(1, 1),
        padding=((1, 1), (1, 1)),
        dimension_numbers=("NCHW", "OIHW", "NCHW"))
    out = out + bias.reshape(1, -1, 1, 1)
    return jnp.where(out > 0, out, neg_slope * out)


if __name__ == "__main__":
    N, Cin, H, W = 2, 4, 16, 16
    Cout, K = 8, 3

    key = jax.random.PRNGKey(0)
    kx, kwt, kb = jax.random.split(key, 3)
    x = jax.random.normal(kx, (N, Cin, H, W), dtype=jnp.float32)
    fan_in = Cin * K * K
    bound = 1.0 / (fan_in ** 0.5)
    weight = jax.random.uniform(kwt, (Cout, Cin, K, K), minval=-bound,
                                maxval=bound, dtype=jnp.float32)
    bias = jax.random.uniform(kb, (Cout,), minval=-bound, maxval=bound,
                              dtype=jnp.float32)

    out = jax.block_until_ready(conv2d_layer_forward(x, weight, bias))
    ref = jax.block_until_ready(_reference_forward(x, weight, bias))

    assert out.shape == (N, Cout, H, W), out.shape
    max_err = float(jnp.max(jnp.abs(out - ref)))
    assert jnp.allclose(out, ref, atol=1e-4, rtol=1e-4), max_err

    print("KERNEL_OK")
</pallas_src>

<mosaic_0001>
module attributes {stable_mosaic.version = 11 : i64} {
  func.func @_conv3x3_lrelu_kernel(%arg0: i32, %arg1: i32, %arg2: memref<1x4x256xf32, #tpu.memory_space<vmem>>, %arg3: memref<1x4x256xf32, #tpu.memory_space<vmem>>, %arg4: memref<1x256xi32, #tpu.memory_space<vmem>>, %arg5: memref<9x8x4xf32, #tpu.memory_space<vmem>>, %arg6: memref<8x1xf32, #tpu.memory_space<vmem>>, %arg7: memref<1x8x256xf32, #tpu.memory_space<vmem>>) attributes {dimension_semantics = [#tpu.dimension_semantics<parallel>, #tpu.dimension_semantics<parallel>], iteration_bounds = array<i64: 2, 1>, scalar_prefetch = 0 : i64, scratch_operands = 0 : i64, tpu.core_type = #tpu.core_type<tc>, window_params = [{transform_indices = @transform_0, window_bounds = array<i64: 1, 4, 256>}, {transform_indices = @transform_1, window_bounds = array<i64: 1, 4, 256>}, {transform_indices = @transform_2, window_bounds = array<i64: 1, 256>}, {pipeline_mode = #tpu.pipeline_mode<synchronous>, transform_indices = @transform_3, window_bounds = array<i64: 9, 8, 4>}, {pipeline_mode = #tpu.pipeline_mode<synchronous>, transform_indices = @transform_4, window_bounds = array<i64: 8, 1>}, {transform_indices = @transform_5, window_bounds = array<i64: 1, 8, 256>}]} {
    %c0 = arith.constant 0 : index
    %c0_0 = arith.constant 0 : index
    %c0_1 = arith.constant 0 : index
    %0 = vector.load %arg2[%c0, %c0_0, %c0_1] : memref<1x4x256xf32, #tpu.memory_space<vmem>>, vector<1x4x256xf32>
    %1 = vector.shape_cast %0 : vector<1x4x256xf32> to vector<4x256xf32>
    %c0_2 = arith.constant 0 : index
    %c0_3 = arith.constant 0 : index
    %c0_4 = arith.constant 0 : index
    %2 = vector.load %arg3[%c0_2, %c0_3, %c0_4] : memref<1x4x256xf32, #tpu.memory_space<vmem>>, vector<1x4x256xf32>
    %3 = vector.shape_cast %2 : vector<1x4x256xf32> to vector<4x256xf32>
    %4 = tpu.concatenate %1, %3 in 1 : vector<4x256xf32>, vector<4x256xf32> -> vector<4x512xf32>
    %c0_5 = arith.constant 0 : index
    %c0_6 = arith.constant 0 : index
    %5 = vector.load %arg4[%c0_5, %c0_6] : memref<1x256xi32, #tpu.memory_space<vmem>>, vector<1x256xi32>
    %c0_i32 = arith.constant 0 : i32
    %6 = vector.broadcast %c0_i32 : i32 to vector<1x256xi32>
    %7 = arith.cmpi sgt, %5, %6 : vector<1x256xi32>
    %c15_i32 = arith.constant 15 : i32
    %8 = vector.broadcast %c15_i32 : i32 to vector<1x256xi32>
    %9 = arith.cmpi slt, %5, %8 : vector<1x256xi32>
    %c0_7 = arith.constant 0 : index
    %c0_8 = arith.constant 0 : index
    %10 = vector.load %arg6[%c0_7, %c0_8] : memref<8x1xf32, #tpu.memory_space<vmem>>, vector<8x1xf32>
    %11 = vector.shape_cast %10 : vector<8x1xf32> to vector<8x1xf32>
    %12 = vector.broadcast %11 : vector<8x1xf32> to vector<8x256xf32>
    %13 = vector.extract_strided_slice %4 {offsets = [0, 15], sizes = [4, 256], strides = [1, 1]} : vector<4x512xf32> to vector<4x256xf32>
    %c0_i32_9 = arith.constant 0 : i32
    %14 = arith.sitofp %c0_i32_9 : i32 to f32
    %15 = vector.shape_cast %7 : vector<1x256xi1> to vector<1x256xi1>
    %16 = vector.broadcast %15 : vector<1x256xi1> to vector<4x256xi1>
    %17 = vector.broadcast %14 : f32 to vector<4x256xf32>
    %18 = arith.select %16, %13, %17 : vector<4x256xi1>, vector<4x256xf32>
    %c0_10 = arith.constant 0 : index
    %c0_11 = arith.constant 0 : index
    %c0_12 = arith.constant 0 : index
    %19 = vector.load %arg5[%c0_10, %c0_11, %c0_12] : memref<9x8x4xf32, #tpu.memory_space<vmem>>, vector<1x8x4xf32>
    %20 = vector.shape_cast %19 : vector<1x8x4xf32> to vector<8x4xf32>
    %cst = arith.constant dense<0.000000e+00> : vector<8x256xf32>
    %21 = tpu.matmul %20, %18, %cst {dimension_numbers = #tpu.dot_dimension_numbers<[1], [0], [0], [1], [0, 0, 1, 1], [], []>} : vector<8x4xf32>, vector<4x256xf32>, vector<8x256xf32> -> vector<8x256xf32>
    %22 = arith.addf %12, %21 : vector<8x256xf32>
    %23 = vector.extract_strided_slice %4 {offsets = [0, 16], sizes = [4, 256], strides = [1, 1]} : vector<4x512xf32> to vector<4x256xf32>
    %c1 = arith.constant 1 : index
    %c0_13 = arith.constant 0 : index
    %c0_14 = arith.constant 0 : index
    %24 = vector.load %arg5[%c1, %c0_13, %c0_14] : memref<9x8x4xf32, #tpu.memory_space<vmem>>, vector<1x8x4xf32>
    %25 = vector.shape_cast %24 : vector<1x8x4xf32> to vector<8x4xf32>
    %cst_15 = arith.constant dense<0.000000e+00> : vector<8x256xf32>
    %26 = tpu.matmul %25, %23, %cst_15 {dimension_numbers = #tpu.dot_dimension_numbers<[1], [0], [0], [1], [0, 0, 1, 1], [], []>} : vector<8x4xf32>, vector<4x256xf32>, vector<8x256xf32> -> vector<8x256xf32>
    %27 = arith.addf %22, %26 : vector<8x256xf32>
    %28 = vector.extract_strided_slice %4 {offsets = [0, 17], sizes = [4, 256], strides = [1, 1]} : vector<4x512xf32> to vector<4x256xf32>
    %c0_i32_16 = arith.constant 0 : i32
    %29 = arith.sitofp %c0_i32_16 : i32 to f32
    %30 = vector.shape_cast %9 : vector<1x256xi1> to vector<1x256xi1>
    %31 = vector.broadcast %30 : vector<1x256xi1> to vector<4x256xi1>
    %32 = vector.broadcast %29 : f32 to vector<4x256xf32>
    %33 = arith.select %31, %28, %32 : vector<4x256xi1>, vector<4x256xf32>
    %c2 = arith.constant 2 : index
    %c0_17 = arith.constant 0 : index
    %c0_18 = arith.constant 0 : index
    %34 = vector.load %arg5[%c2, %c0_17, %c0_18] : memref<9x8x4xf32, #tpu.memory_space<vmem>>, vector<1x8x4xf32>
    %35 = vector.shape_cast %34 : vector<1x8x4xf32> to vector<8x4xf32>
    %cst_19 = arith.constant dense<0.000000e+00> : vector<8x256xf32>
    %36 = tpu.matmul %35, %33, %cst_19 {dimension_numbers = #tpu.dot_dimension_numbers<[1], [0], [0], [1], [0, 0, 1, 1], [], []>} : vector<8x4xf32>, vector<4x256xf32>, vector<8x256xf32> -> vector<8x256xf32>
    %37 = arith.addf %27, %36 : vector<8x256xf32>
    %38 = vector.extract_strided_slice %4 {offsets = [0, 31], sizes = [4, 256], strides = [1, 1]} : vector<4x512xf32> to vector<4x256xf32>
    %c0_i32_20 = arith.constant 0 : i32
    %39 = arith.sitofp %c0_i32_20 : i32 to f32
    %40 = vector.shape_cast %7 : vector<1x256xi1> to vector<1x256xi1>
    %41 = vector.broadcast %40 : vector<1x256xi1> to vector<4x256xi1>
    %42 = vector.broadcast %39 : f32 to vector<4x256xf32>
    %43 = arith.select %41, %38, %42 : vector<4x256xi1>, vector<4x256xf32>
    %c3 = arith.constant 3 : index
    %c0_21 = arith.constant 0 : index
    %c0_22 = arith.constant 0 : index
    %44 = vector.load %arg5[%c3, %c0_21, %c0_22] : memref<9x8x4xf32, #tpu.memory_space<vmem>>, vector<1x8x4xf32>
    %45 = vector.shape_cast %44 : vector<1x8x4xf32> to vector<8x4xf32>
    %cst_23 = arith.constant dense<0.000000e+00> : vector<8x256xf32>
    %46 = tpu.matmul %45, %43, %cst_23 {dimension_numbers = #tpu.dot_dimension_numbers<[1], [0], [0], [1], [0, 0, 1, 1], [], []>} : vector<8x4xf32>, vector<4x256xf32>, vector<8x256xf32> -> vector<8x256xf32>
    %47 = arith.addf %37, %46 : vector<8x256xf32>
    %48 = vector.extract_strided_slice %4 {offsets = [0, 32], sizes = [4, 256], strides = [1, 1]} : vector<4x512xf32> to vector<4x256xf32>
    %c4 = arith.constant 4 : index
    %c0_24 = arith.constant 0 : index
    %c0_25 = arith.constant 0 : index
    %49 = vector.load %arg5[%c4, %c0_24, %c0_25] : memref<9x8x4xf32, #tpu.memory_space<vmem>>, vector<1x8x4xf32>
    %50 = vector.shape_cast %49 : vector<1x8x4xf32> to vector<8x4xf32>
    %cst_26 = arith.constant dense<0.000000e+00> : vector<8x256xf32>
    %51 = tpu.matmul %50, %48, %cst_26 {dimension_numbers = #tpu.dot_dimension_numbers<[1], [0], [0], [1], [0, 0, 1, 1], [], []>} : vector<8x4xf32>, vector<4x256xf32>, vector<8x256xf32> -> vector<8x256xf32>
    %52 = arith.addf %47, %51 : vector<8x256xf32>
    %53 = vector.extract_strided_slice %4 {offsets = [0, 33], sizes = [4, 256], strides = [1, 1]} : vector<4x512xf32> to vector<4x256xf32>
    %c0_i32_27 = arith.constant 0 : i32
    %54 = arith.sitofp %c0_i32_27 : i32 to f32
    %55 = vector.shape_cast %9 : vector<1x256xi1> to vector<1x256xi1>
    %56 = vector.broadcast %55 : vector<1x256xi1> to vector<4x256xi1>
    %57 = vector.broadcast %54 : f32 to vector<4x256xf32>
    %58 = arith.select %56, %53, %57 : vector<4x256xi1>, vector<4x256xf32>
    %c5 = arith.constant 5 : index
    %c0_28 = arith.constant 0 : index
    %c0_29 = arith.constant 0 : index
    %59 = vector.load %arg5[%c5, %c0_28, %c0_29] : memref<9x8x4xf32, #tpu.memory_space<vmem>>, vector<1x8x4xf32>
    %60 = vector.shape_cast %59 : vector<1x8x4xf32> to vector<8x4xf32>
    %cst_30 = arith.constant dense<0.000000e+00> : vector<8x256xf32>
    %61 = tpu.matmul %60, %58, %cst_30 {dimension_numbers = #tpu.dot_dimension_numbers<[1], [0], [0], [1], [0, 0, 1, 1], [], []>} : vector<8x4xf32>, vector<4x256xf32>, vector<8x256xf32> -> vector<8x256xf32>
    %62 = arith.addf %52, %61 : vector<8x256xf32>
    %63 = vector.extract_strided_slice %4 {offsets = [0, 47], sizes = [4, 256], strides = [1, 1]} : vector<4x512xf32> to vector<4x256xf32>
    %c0_i32_31 = arith.constant 0 : i32
    %64 = arith.sitofp %c0_i32_31 : i32 to f32
    %65 = vector.shape_cast %7 : vector<1x256xi1> to vector<1x256xi1>
    %66 = vector.broadcast %65 : vector<1x256xi1> to vector<4x256xi1>
    %67 = vector.broadcast %64 : f32 to vector<4x256xf32>
    %68 = arith.select %66, %63, %67 : vector<4x256xi1>, vector<4x256xf32>
    %c6 = arith.constant 6 : index
    %c0_32 = arith.constant 0 : index
    %c0_33 = arith.constant 0 : index
    %69 = vector.load %arg5[%c6, %c0_32, %c0_33] : memref<9x8x4xf32, #tpu.memory_space<vmem>>, vector<1x8x4xf32>
    %70 = vector.shape_cast %69 : vector<1x8x4xf32> to vector<8x4xf32>
    %cst_34 = arith.constant dense<0.000000e+00> : vector<8x256xf32>
    %71 = tpu.matmul %70, %68, %cst_34 {dimension_numbers = #tpu.dot_dimension_numbers<[1], [0], [0], [1], [0, 0, 1, 1], [], []>} : vector<8x4xf32>, vector<4x256xf32>, vector<8x256xf32> -> vector<8x256xf32>
    %72 = arith.addf %62, %71 : vector<8x256xf32>
    %73 = vector.extract_strided_slice %4 {offsets = [0, 48], sizes = [4, 256], strides = [1, 1]} : vector<4x512xf32> to vector<4x256xf32>
    %c7 = arith.constant 7 : index
    %c0_35 = arith.constant 0 : index
    %c0_36 = arith.constant 0 : index
    %74 = vector.load %arg5[%c7, %c0_35, %c0_36] : memref<9x8x4xf32, #tpu.memory_space<vmem>>, vector<1x8x4xf32>
    %75 = vector.shape_cast %74 : vector<1x8x4xf32> to vector<8x4xf32>
    %cst_37 = arith.constant dense<0.000000e+00> : vector<8x256xf32>
    %76 = tpu.matmul %75, %73, %cst_37 {dimension_numbers = #tpu.dot_dimension_numbers<[1], [0], [0], [1], [0, 0, 1, 1], [], []>} : vector<8x4xf32>, vector<4x256xf32>, vector<8x256xf32> -> vector<8x256xf32>
    %77 = arith.addf %72, %76 : vector<8x256xf32>
    %78 = vector.extract_strided_slice %4 {offsets = [0, 49], sizes = [4, 256], strides = [1, 1]} : vector<4x512xf32> to vector<4x256xf32>
    %c0_i32_38 = arith.constant 0 : i32
    %79 = arith.sitofp %c0_i32_38 : i32 to f32
    %80 = vector.shape_cast %9 : vector<1x256xi1> to vector<1x256xi1>
    %81 = vector.broadcast %80 : vector<1x256xi1> to vector<4x256xi1>
    %82 = vector.broadcast %79 : f32 to vector<4x256xf32>
    %83 = arith.select %81, %78, %82 : vector<4x256xi1>, vector<4x256xf32>
    %c8 = arith.constant 8 : index
    %c0_39 = arith.constant 0 : index
    %c0_40 = arith.constant 0 : index
    %84 = vector.load %arg5[%c8, %c0_39, %c0_40] : memref<9x8x4xf32, #tpu.memory_space<vmem>>, vector<1x8x4xf32>
    %85 = vector.shape_cast %84 : vector<1x8x4xf32> to vector<8x4xf32>
    %cst_41 = arith.constant dense<0.000000e+00> : vector<8x256xf32>
    %86 = tpu.matmul %85, %83, %cst_41 {dimension_numbers = #tpu.dot_dimension_numbers<[1], [0], [0], [1], [0, 0, 1, 1], [], []>} : vector<8x4xf32>, vector<4x256xf32>, vector<8x256xf32> -> vector<8x256xf32>
    %87 = arith.addf %77, %86 : vector<8x256xf32>
    %cst_42 = arith.constant 0.000000e+00 : f32
    %88 = vector.broadcast %cst_42 : f32 to vector<8x256xf32>
    %89 = arith.cmpf ogt, %87, %88 : vector<8x256xf32>
    %cst_43 = arith.constant 2.000000e-01 : f32
    %90 = vector.broadcast %cst_43 : f32 to vector<8x256xf32>
    %91 = arith.mulf %90, %87 : vector<8x256xf32>
    %92 = arith.select %89, %87, %91 : vector<8x256xi1>, vector<8x256xf32>
    %c0_44 = arith.constant 0 : index
    %c0_45 = arith.constant 0 : index
    %c0_46 = arith.constant 0 : index
    %93 = vector.load %arg7[%c0_44, %c0_45, %c0_46] : memref<1x8x256xf32, #tpu.memory_space<vmem>>, vector<1x8x256xf32>
    %94 = vector.shape_cast %93 : vector<1x8x256xf32> to vector<8x256xf32>
    %95 = vector.shape_cast %92 : vector<8x256xf32> to vector<1x8x256xf32>
    tpu.vector_store %arg7[%c0_44, %c0_45, %c0_46], %95 {strides = array<i32>} : memref<1x8x256xf32, #tpu.memory_space<vmem>>, vector<1x8x256xf32>,
    return
  }
  func.func @transform_0(%arg0: i32, %arg1: i32) -> (i32, i32, i32) {
    %c0_i32 = arith.constant 0 : i32
    %c0_i32_0 = arith.constant 0 : i32
    return %arg0, %c0_i32, %arg1 : i32, i32, i32
  }
  func.func @transform_1(%arg0: i32, %arg1: i32) -> (i32, i32, i32) {
    %c1_i32 = arith.constant 1 : i32
    %0 = arith.addi %arg1, %c1_i32 : i32
    %c0_i32 = arith.constant 0 : i32
    %c0_i32_0 = arith.constant 0 : i32
    return %arg0, %c0_i32, %0 : i32, i32, i32
  }
  func.func @transform_2(%arg0: i32, %arg1: i32) -> (i32, i32) {
    %c0_i32 = arith.constant 0 : i32
    %c0_i32_0 = arith.constant 0 : i32
    return %c0_i32, %arg1 : i32, i32
  }
  func.func @transform_3(%arg0: i32, %arg1: i32) -> (i32, i32, i32) {
    %c0_i32 = arith.constant 0 : i32
    %c0_i32_0 = arith.constant 0 : i32
    %c0_i32_1 = arith.constant 0 : i32
    %c0_i32_2 = arith.constant 0 : i32
    return %c0_i32, %c0_i32_0, %c0_i32_1 : i32, i32, i32
  }
  func.func @transform_4(%arg0: i32, %arg1: i32) -> (i32, i32) {
    %c0_i32 = arith.constant 0 : i32
    %c0_i32_0 = arith.constant 0 : i32
    %c0_i32_1 = arith.constant 0 : i32
    return %c0_i32, %c0_i32_0 : i32, i32
  }
  func.func @transform_5(%arg0: i32, %arg1: i32) -> (i32, i32, i32) {
    %c0_i32 = arith.constant 0 : i32
    %c0_i32_0 = arith.constant 0 : i32
    return %arg0, %c0_i32, %arg1 : i32, i32, i32
  }
}

</mosaic_0001>

<llo_original>
// kernel: tpu_custom_call.1
$region0: #{tpu_custom_call.1}
  #allocation0 [shape = 'u32[]', space=smem, size = 0x4, offset = 0x4, fixed_abs, tag = 'smem constant byte address 0x4 - core index']
  #allocation1 [shape = 'u32[144,128]{1,0:T(1,128)}', space=vmem, size = 0x12000, scoped, tag = 'internal scratch']
  %s0 = inlined_call_operand.vmem [shape: f32[2,4,512], index: 0, kind: input, shape index: {}]
  %s1 = inlined_call_operand.vmem [shape: f32[2,4,512], index: 1, kind: input, shape index: {}]
  %s2 = inlined_call_operand.vmem [shape: s32[1,256], index: 2, kind: input, shape index: {}]
  %s3 = inlined_call_operand.vmem [shape: f32[9,8,4], index: 3, kind: input, shape index: {}]
  %s4 = inlined_call_operand.vmem [shape: f32[8,1], index: 4, kind: input, shape index: {}]
  %s5 = inlined_call_operand.hbm [shape: f32[2,8,256], index: 5, kind: output, shape index: {}]
  %s6 = sld [smem:[#allocation0]]
  $region53: #{tpu_custom_call.1} parent=0
    _
  %s8 = ssub.s32 1, %s6
  %s9 = scalar_select 0, %s8, %s6
  $region1: #{tpu_custom_call.1} parent=0
    #allocation2 [shape = 'u8[16384]{0}', space=vmem, size = 0x4000, scoped, tag = 'output window, operand 0']
    #allocation3 [shape = 's32[2]{0}', space=sflag, size = 0x8, scoped, tag = 'scoped memory for tpu_custom_call.1']
    %10 = vsyncpa [#allocation3], 0
    %s11 = scalar_lea.sflag [#allocation3], 1
    %12 = vsyncpa %s11, 0
    loop: start=0, step=1, limit=4
    $region2: #{tpu_custom_call.1} parent=1 // loop_pre_header
      _
    $region3: #{tpu_custom_call.1} parent=1 // loop_header
      %s14 = sphi 0, %s18
      %p15 = scmp.ge.s32.totalorder %s14, 4
      %s21 = sphi 0, %s33
      %s22 = sphi 0, %s29
      %s23 = sphi 0, %s21
      %s24 = sphi 0, %s22
      %s25 = sphi 0, %s23
      %s26 = sphi 0, %s24
      %s38 = sphi 0, %s40
      %s41 = sphi 0, %s38
      %s42 = sphi 0, %s41
      %s58 = sphi 0, %s42
      %s68 = sphi 0, %s70
      %s71 = sphi 0, %s68
      %s72 = sphi 0, %s71
      %s88 = sphi 0, %s72
      %s94 = sphi 0, %s96
      %s97 = sphi 0, %s94
      %s98 = sphi 0, %s97
      %s114 = sphi 0, %s98
      %s118 = sphi 0, %s118
      %s120 = sphi 0, %s118
      %s121 = sphi 0, %s120
      %s135 = sphi 0, %s121
      %s139 = sphi 0, %s139
      %s141 = sphi 0, %s139
      %s142 = sphi 0, %s141
      %s156 = sphi 0, %s142
      %s164 = sphi 0, %s166
      %s167 = sphi 0, %s164
      %s168 = sphi 0, %s167
      %s184 = sphi 0, %s168
    $region4: #{tpu_custom_call.1} parent=1 // loop_header_branch
      %17 = sbr.rel (%p15) target = $region8
    $region5: #{tpu_custom_call.1} parent=1 // loop_body
      %s19 = ssub.s32 %s14, 1
      %s20 = ssub.s32 %s14, 2
      %s27 = sadd.s32 1, %s22
      %p28 = scmp.ge.s32.totalorder %s27, 1
      %s29 = scalar_select %p28, 0, %s27
      %s30 = sadd.s32 1, %s21
      %s31 = scalar_select %p28, %s30, %s21
      %p32 = scmp.ge.s32.totalorder %s31, 2
      %s33 = scalar_select %p32, 0, %s31
      %s34 = ssub.s32 %s21, %s33
      %s35 = ssub.s32 %s22, %s29
      %s36 = sor.u32 %s34, %s35
      %p37 = scmp.eq.s32.totalorder %s36, 0
      %s39 = sadd.s32 %s38, 1
      %s40 = scalar_select %p37, %s38, %s39
      %p43 = pneg %p37
      %p44 = scmp.eq.s32.totalorder %s14, 1
      %p45 = por %p43, %p44
      %p46 = scmp.ne.s32.totalorder %s38, %s41
      %p47 = scmp.eq.s32.totalorder %s14, 0
      %p48 = por %p46, %p47
      %p49 = scmp.ne.s32.totalorder %s38, %s41
      %p50 = scmp.eq.s32.totalorder %s19, 1
      %p51 = por %p49, %p50
      %p52 = scmp.ne.s32.totalorder %s41, %s42
      %p53 = scmp.eq.s32.totalorder %s19, 0
      %p54 = por %p52, %p53
      %p55 = scmp.ne.s32.totalorder %s41, %s42
      %p56 = scmp.eq.s32.totalorder %s20, 1
      %p57 = por %p55, %p56
      %p59 = scmp.ne.s32.totalorder %s42, %s58
      %p60 = scmp.eq.s32.totalorder %s20, 0
      %p61 = por %p59, %p60
      %s62 = sadd.s32 %s22, 1
      %s63 = sadd.s32 %s29, 1
      %s64 = ssub.s32 %s21, %s33
      %s65 = ssub.s32 %s62, %s63
      %s66 = sor.u32 %s64, %s65
      %p67 = scmp.eq.s32.totalorder %s66, 0
      %s69 = sadd.s32 %s68, 1
      %s70 = scalar_select %p67, %s68, %s69
      %p73 = pneg %p67
      %p74 = scmp.eq.s32.totalorder %s14, 1
      %p75 = por %p73, %p74
      %p76 = scmp.ne.s32.totalorder %s68, %s71
      %p77 = scmp.eq.s32.totalorder %s14, 0
      %p78 = por %p76, %p77
      %p79 = scmp.ne.s32.totalorder %s68, %s71
      %p80 = scmp.eq.s32.totalorder %s19, 1
      %p81 = por %p79, %p80
      %p82 = scmp.ne.s32.totalorder %s71, %s72
      %p83 = scmp.eq.s32.totalorder %s19, 0
      %p84 = por %p82, %p83
      %p85 = scmp.ne.s32.totalorder %s71, %s72
      %p86 = scmp.eq.s32.totalorder %s20, 1
      %p87 = por %p85, %p86
      %p89 = scmp.ne.s32.totalorder %s72, %s88
      %p90 = scmp.eq.s32.totalorder %s20, 0
      %p91 = por %p89, %p90
      %s92 = ssub.s32 %s22, %s29
      %p93 = scmp.eq.s32.totalorder %s92, 0
      %s95 = sadd.s32 %s94, 1
      %s96 = scalar_select %p93, %s94, %s95
      %p99 = pneg %p93
      %p100 = scmp.eq.s32.totalorder %s14, 1
      %p101 = por %p99, %p100
      %p102 = scmp.ne.s32.totalorder %s94, %s97
      %p103 = scmp.eq.s32.totalorder %s14, 0
      %p104 = por %p102, %p103
      %p105 = scmp.ne.s32.totalorder %s94, %s97
      %p106 = scmp.eq.s32.totalorder %s19, 1
      %p107 = por %p105, %p106
      %p108 = scmp.ne.s32.totalorder %s97, %s98
      %p109 = scmp.eq.s32.totalorder %s19, 0
      %p110 = por %p108, %p109
      %p111 = scmp.ne.s32.totalorder %s97, %s98
      %p112 = scmp.eq.s32.totalorder %s20, 1
      %p113 = por %p111, %p112
      %p115 = scmp.ne.s32.totalorder %s98, %s114
      %p116 = scmp.eq.s32.totalorder %s20, 0
      %p117 = por %p115, %p116
      %s119 = sadd.s32 %s118, 1
      %p122 = scmp.eq.s32.totalorder %s14, 1
      %p123 = scmp.ne.s32.totalorder %s118, %s120
      %p124 = scmp.eq.s32.totalorder %s14, 0
      %p125 = por %p123, %p124
      %p126 = scmp.ne.s32.totalorder %s118, %s120
      %p127 = scmp.eq.s32.totalorder %s19, 1
      %p128 = por %p126, %p127
      %p129 = scmp.ne.s32.totalorder %s120, %s121
      %p130 = scmp.eq.s32.totalorder %s19, 0
      %p131 = por %p129, %p130
      %p132 = scmp.ne.s32.totalorder %s120, %s121
      %p133 = scmp.eq.s32.totalorder %s20, 1
      %p134 = por %p132, %p133
      %p136 = scmp.ne.s32.totalorder %s121, %s135
      %p137 = scmp.eq.s32.totalorder %s20, 0
      %p138 = por %p136, %p137
      %s140 = sadd.s32 %s139, 1
      %p143 = scmp.eq.s32.totalorder %s14, 1
      %p144 = scmp.ne.s32.totalorder %s139, %s141
      %p145 = scmp.eq.s32.totalorder %s14, 0
      %p146 = por %p144, %p145
      %p147 = scmp.ne.s32.totalorder %s139, %s141
      %p148 = scmp.eq.s32.totalorder %s19, 1
      %p149 = por %p147, %p148
      %p150 = scmp.ne.s32.totalorder %s141, %s142
      %p151 = scmp.eq.s32.totalorder %s19, 0
      %p152 = por %p150, %p151
      %p153 = scmp.ne.s32.totalorder %s141, %s142
      %p154 = scmp.eq.s32.totalorder %s20, 1
      %p155 = por %p153, %p154
      %p157 = scmp.ne.s32.totalorder %s142, %s156
      %p158 = scmp.eq.s32.totalorder %s20, 0
      %p159 = por %p157, %p158
      %s160 = ssub.s32 %s21, %s33
      %s161 = ssub.s32 %s22, %s29
      %s162 = sor.u32 %s160, %s161
      %p163 = scmp.eq.s32.totalorder %s162, 0
      %s165 = sadd.s32 %s164, 1
      %s166 = scalar_select %p163, %s164, %s165
      %p169 = pneg %p163
      %p170 = scmp.eq.s32.totalorder %s14, 1
      %p171 = por %p169, %p170
      %p172 = scmp.ne.s32.totalorder %s164, %s167
      %p173 = scmp.eq.s32.totalorder %s14, 0
      %p174 = por %p172, %p173
      %p175 = scmp.ne.s32.totalorder %s164, %s167
      %p176 = scmp.eq.s32.totalorder %s19, 1
      %p177 = por %p175, %p176
      %p178 = scmp.ne.s32.totalorder %s167, %s168
      %p179 = scmp.eq.s32.totalorder %s19, 0
      %p180 = por %p178, %p179
      %p181 = scmp.ne.s32.totalorder %s167, %s168
      %p182 = scmp.eq.s32.totalorder %s20, 1
      %p183 = por %p181, %p182
      %p185 = scmp.ne.s32.totalorder %s168, %s184
      %p186 = scmp.eq.s32.totalorder %s20, 0
      %p187 = por %p185, %p186
      %p188 = scmp.le.s32.totalorder 1, %s14
      %p189 = scmp.lt.s32.totalorder %s14, 3
      %p190 = pnand %p188, %p189
      %p191 = pneg %p190
      // Predicated region
      $region9: #{tpu_custom_call.1} parent=5 // pred_check
        _
      $region10: #{tpu_custom_call.1} parent=5 // pred_check_branch
        %193 = sbr.rel (%p190) target = $region12
      $region11: #{tpu_custom_call.1} parent=5 // pred_region
        %s194 = ssub.s32 %s14, 1
        // Predicated region
        $region13: #{tpu_custom_call.1} parent=11 // pred_check
          %p195 = pneg %p110
        $region14: #{tpu_custom_call.1} parent=11 // pred_check_branch
          %197 = sbr.rel (%p195) target = $region16
        $region15: #{tpu_custom_call.1} parent=11 // pred_region
          %s198 = smul.u32 2, %s24
          %p199 = scmp.lt.s32.totalorder %s198, 1
          %s200 = scalar_select %p199, %s198, 1
          %s201 = scalar_lea.vmem %s2, %s200
          %s202 = smul.u32 2, %s24
        $region16: #{tpu_custom_call.1} parent=11 // pred_fallthru
          _
        // Predicated region
        $region17: #{tpu_custom_call.1} parent=11 // pred_check
          %p203 = pneg %p131
        $region18: #{tpu_custom_call.1} parent=11 // pred_check_branch
          %205 = sbr.rel (%p203) target = $region20
        $region19: #{tpu_custom_call.1} parent=11 // pred_region
          _
        $region20: #{tpu_custom_call.1} parent=11 // pred_fallthru
          _
        // Predicated region
        $region21: #{tpu_custom_call.1} parent=11 // pred_check
          %p206 = pneg %p152
        $region22: #{tpu_custom_call.1} parent=11 // pred_check_branch
          %208 = sbr.rel (%p206) target = $region24
        $region23: #{tpu_custom_call.1} parent=11 // pred_region
          _
        $region24: #{tpu_custom_call.1} parent=11 // pred_fallthru
          _
      $region12: #{tpu_custom_call.1} parent=5 // pred_fallthru
        _
      %p209 = scmp.lt.s32.totalorder %s14, 2
      // Predicated region
      $region25: #{tpu_custom_call.1} parent=5 // pred_check
        %p210 = pneg %p209
      $region26: #{tpu_custom_call.1} parent=5 // pred_check_branch
        %212 = sbr.rel (%p210) target = $region28
      $region27: #{tpu_custom_call.1} parent=5 // pred_region
        // Predicated region
        $region29: #{tpu_custom_call.1} parent=27 // pred_check
          %p213 = pneg %p48
        $region30: #{tpu_custom_call.1} parent=27 // pred_check_branch
          %215 = sbr.rel (%p213) target = $region32
        $region31: #{tpu_custom_call.1} parent=27 // pred_region
          %s216 = smul.u32 2, %s22
          %p217 = scmp.lt.s32.totalorder %s21, 1
          %s218 = scalar_select %p217, %s21, 1
          %p219 = scmp.lt.s32.totalorder %s216, 3
          %s220 = scalar_select %p219, %s216, 3
          %s221 = smul.addr %s218, 4
          %s222 = sadd.s32 %s220, %s221
          %s223 = smul.addr %s222, 4
          %s224 = scalar_lea.vmem %s0, %s223
          %s225 = smul.u32 2, %s22
        $region32: #{tpu_custom_call.1} parent=27 // pred_fallthru
          _
        // Predicated region
        $region33: #{tpu_custom_call.1} parent=27 // pred_check
          %p226 = pneg %p78
        $region34: #{tpu_custom_call.1} parent=27 // pred_check_branch
          %228 = sbr.rel (%p226) target = $region36
        $region35: #{tpu_custom_call.1} parent=27 // pred_region
          %s229 = sadd.s32 %s22, 1
          %s230 = smul.u32 2, %s229
          %p231 = scmp.lt.s32.totalorder %s21, 1
          %s232 = scalar_select %p231, %s21, 1
          %p233 = scmp.lt.s32.totalorder %s230, 3
          %s234 = scalar_select %p233, %s230, 3
          %s235 = smul.addr %s232, 4
          %s236 = sadd.s32 %s234, %s235
          %s237 = smul.addr %s236, 4
          %s238 = scalar_lea.vmem %s1, %s237
          %s239 = sadd.s32 %s22, 1
          %s240 = smul.u32 2, %s239
        $region36: #{tpu_custom_call.1} parent=27 // pred_fallthru
          _
      $region28: #{tpu_custom_call.1} parent=5 // pred_fallthru
        _
      %p241 = scmp.le.s32.totalorder 1, %s14
      %p242 = scmp.lt.s32.totalorder %s14, 3
      %p243 = pnand %p241, %p242
      %p244 = pneg %p243
      // Predicated region
      $region37: #{tpu_custom_call.1} parent=5 // pred_check
        _
      $region38: #{tpu_custom_call.1} parent=5 // pred_check_branch
        %246 = sbr.rel (%p243) target = $region40
      $region39: #{tpu_custom_call.1} parent=5 // pred_region
        %s247 = ssub.s32 %s14, 1
        %s248 = smul.u32 2, %s24
        %p249 = scmp.lt.s32.totalorder %s23, 1
        %s250 = scalar_select %p249, %s23, 1
        %p251 = scmp.lt.s32.totalorder %s248, 3
        %s252 = scalar_select %p251, %s248, 3
        %s253 = smul.addr %s250, 4
        %s254 = sadd.s32 %s252, %s253
        %s255 = smul.addr %s254, 4
        %s256 = scalar_lea.vmem %s0, %s255
        %p257 = pneg %p54
        %p258 = pneg %p51
        %s259 = sadd.s32 %s24, 1
        %s260 = smul.u32 2, %s259
        %p261 = scmp.lt.s32.totalorder %s23, 1
        %s262 = scalar_select %p261, %s23, 1
        %p263 = scmp.lt.s32.totalorder %s260, 3
        %s264 = scalar_select %p263, %s260, 3
        %s265 = smul.addr %s262, 4
        %s266 = sadd.s32 %s264, %s265
        %s267 = smul.addr %s266, 4
        %s268 = scalar_lea.vmem %s1, %s267
        %p269 = pneg %p84
        %p270 = pneg %p81
        %s271 = smul.u32 2, %s24
        %p272 = scmp.lt.s32.totalorder %s271, 1
        %s273 = scalar_select %p272, %s271, 1
        %s274 = scalar_lea.vmem %s2, %s273
        %p275 = pneg %p110
        %p276 = pneg %p107
        %p277 = pneg %p131
        %p278 = pneg %p128
        %p279 = pneg %p152
        %p280 = pneg %p149
        %p281 = pneg %p180
        %p282 = pneg %p177
        %s283 = sand.u32 %s167, 1
        %s284 = scalar_lea.sflag [#allocation3], %s283
        %s285 = sand.u32 %s167, 1
        %s286 = smul.addr %s285, 16
        %s287 = scalar_lea.vmem [#allocation2], %s286
        %s288 = smul.u32 2, %s24
        %p289 = scmp.lt.s32.totalorder %s23, 1
        %s290 = scalar_select %p289, %s23, 1
        %p291 = scmp.lt.s32.totalorder %s288, 3
        %s292 = scalar_select %p291, %s288, 3
        %s293 = smul.addr %s290, 4
        %s294 = sadd.s32 %s292, %s293
        %s295 = smul.addr %s294, 4
        %s296 = scalar_lea.vmem %s0, %s295
        %s297 = smul.u32 2, %s24
        %s298 = sadd.s32 %s24, 1
        %s299 = smul.u32 2, %s298
        %p300 = scmp.lt.s32.totalorder %s23, 1
        %s301 = scalar_select %p300, %s23, 1
        %p302 = scmp.lt.s32.totalorder %s299, 3
        %s303 = scalar_select %p302, %s299, 3
        %s304 = smul.addr %s301, 4
        %s305 = sadd.s32 %s303, %s304
        %s306 = smul.addr %s305, 4
        %s307 = scalar_lea.vmem %s1, %s306
        %s308 = sadd.s32 %s24, 1
        %s309 = smul.u32 2, %s308
        %s310 = smul.u32 2, %s24
        %p311 = scmp.lt.s32.totalorder %s310, 1
        %s312 = scalar_select %p311, %s310, 1
        %s313 = scalar_lea.vmem %s2, %s312
        %s314 = smul.u32 2, %s24
        %s315 = smul.u32 2, %s24
        %v316 = vld [vmem:[%s296] sm:$0xff]
        %v317 = vld [vmem:[%s307] sm:$0xff]
        %v319 = vcombine.high %v316, %v316
        %v321 = vld [vmem:[%s313] sm:$0x3]
        %vm322 = vcmp.gt.s32.totalorder %v321, 0
        %vm323 = vcmp.lt.s32.totalorder %v321, 15
        %v324 = vld [vmem:[%s4] sm:$0xff]
        %326 = vset.pattern.permute.xlu0 0
        %327 = vperm.xlu0 %326, %v324
        %v328 = vpop.permute.xlu0 %327
        %v330 = vsel %vm322, 1, 0
        %v331 = vlaneseq
        %v332 = vshrl.u32 %v331, 7
        %v333 = vsub.s32 0, %v332
        %v334 = vrot.slane %v330, %v333
        %v335 = vlaneseq
        %v336 = vshrl.u32 %v335, 7
        %v337 = vsub.s32 1, %v336
        %v338 = vrot.slane %v330, %v337
        %vm339 = vcmp.eq.s32.totalorder %v334, 1
        %vm340 = vcmp.eq.s32.totalorder %v338, 1
        %341 = vrot.lane.b32.xlu0 %v316, 113
        %v342 = vpop.permute.xlu0 %341
        %343 = vrot.lane.b32.xlu0 %v319, 113
        %v344 = vpop.permute.xlu0 %343
        %345 = vrot.lane.b32.xlu0 %v317, 113
        %v346 = vpop.permute.xlu0 %345
        %vm347 = vcmask 924672
        %v348 = vsel %vm347, %v342, %v344
        %v349 = vsel %vm347, %v344, %v346
        %v352 = vsel %vm339, %v348, 0.0
        %v353 = vsel %vm340, %v349, 0.0
        %v354 = vld [vmem:[%s3] sm:$0xff]
        %vm355 = vcmask 31744
        %v357 = vsel %vm355, %v354, 0
        %vm359 = vcmask 1043456
        %v361 = vsel %vm359, %v352, 0
        %v364 = vsel %vm359, %v353, 0
        %366 = vmatprep.subr.mxu0 %v364
        %367 = vmatpush1.msra.mxu0 %v361
        %368 = vmatprep.subr.mxu0 0.0
        %369 = vmatpush1.msra.mxu0 0.0
        %370 = vmatprep.subr.mxu0 0.0
        %371 = vmatpush1.msra.mxu0 0.0
        %372 = vmatprep.subr.mxu0 0.0
        %373 = vmatpush1.msra.mxu0 0.0
        %374 = vmatprep.subr.mxu0 0.0
        %375 = vmatpush1.msra.mxu0 0.0
        %376 = vmatprep.subr.mxu0 0.0
        %377 = vmatpush1.msra.mxu0 0.0
        %378 = vmatprep.subr.mxu0 0.0
        %379 = vmatpush1.msra.mxu0 0.0
        %380 = vmatprep.subr.mxu0 0.0
        %381 = vmatpush1.msra.mxu0 0.0
        %382 = vmatprep.subr.mxu0 0.0
        %383 = vmatpush1.msra.mxu0 0.0
        %384 = vmatprep.subr.mxu0 0.0
        %385 = vmatpush1.msra.mxu0 0.0
        %386 = vmatprep.subr.mxu0 0.0
        %387 = vmatpush1.msra.mxu0 0.0
        %388 = vmatprep.subr.mxu0 0.0
        %389 = vmatpush1.msra.mxu0 0.0
        %390 = vmatprep.subr.mxu0 0.0
        %391 = vmatpush1.msra.mxu0 0.0
        %392 = vmatprep.subr.mxu0 0.0
        %393 = vmatpush1.msra.mxu0 0.0
        %394 = vmatprep.subr.mxu0 0.0
        %395 = vmatpush1.msra.mxu0 0.0
        %396 = vmatprep.subr.mxu0 0.0
        %397 = vmatpush1.msra.mxu0 0.0
        %398 = vmatprep.subr.mxu0 0.0
        %399 = vmatpush1.msra.mxu0 0.0
        %400 = vmatprep.subr.mxu0 0.0
        %401 = vmatpush1.msra.mxu0 0.0
        %402 = vmatprep.subr.mxu0 0.0
        %403 = vmatpush1.msra.mxu0 0.0
        %404 = vmatprep.subr.mxu0 0.0
        %405 = vmatpush1.msra.mxu0 0.0
        %406 = vmatprep.subr.mxu0 0.0
        %407 = vmatpush1.msra.mxu0 0.0
        %408 = vmatprep.subr.mxu0 0.0
        %409 = vmatpush1.msra.mxu0 0.0
        %410 = vmatprep.subr.mxu0 0.0
        %411 = vmatpush1.msra.mxu0 0.0
        %412 = vmatprep.subr.mxu0 0.0
        %413 = vmatpush1.msra.mxu0 0.0
        %414 = vmatprep.subr.mxu0 0.0
        %415 = vmatpush1.msra.mxu0 0.0
        %416 = vmatprep.subr.mxu0 0.0
        %417 = vmatpush1.msra.mxu0 0.0
        %418 = vmatprep.subr.mxu0 0.0
        %419 = vmatpush1.msra.mxu0 0.0
        %420 = vmatprep.subr.mxu0 0.0
        %421 = vmatpush1.msra.mxu0 0.0
        %422 = vmatprep.subr.mxu0 0.0
        %423 = vmatpush1.msra.mxu0 0.0
        %424 = vmatprep.subr.mxu0 0.0
        %425 = vmatpush1.msra.mxu0 0.0
        %426 = vmatprep.subr.mxu0 0.0
        %427 = vmatpush1.msra.mxu0 0.0
        %428 = vmatprep.subr.mxu0 0.0
        %429 = vmatpush1.msra.mxu0 0.0
        %430 = vmatprep.mubr.f32.mxu0 0.0
        %431 = vmatmul.mubr.f32.gmra.mrb[0].mxu0 %v357
        %v432 = vpop.f32.mrb[0].mxu0
        %v433 = vadd.f32 0.0, %v432
        %v434 = vpop.f32.mrb[0].mxu0
        %v435 = vadd.f32 0.0, %v434
        %436 = vdwg.mxu0
        %v437 = vadd.f32 %v328, %v433
        %v438 = vadd.f32 %v328, %v435
        %s439 = scalar_lea.vmem %s3, 8
        %v440 = vld [vmem:[%s439] sm:$0xff]
        %441 = vrot.lane.b32.xlu0 %v316, 112
        %v442 = vpop.permute.xlu0 %441
        %443 = vrot.lane.b32.xlu0 %v319, 112
        %v444 = vpop.permute.xlu0 %443
        %445 = vrot.lane.b32.xlu0 %v317, 112
        %v446 = vpop.permute.xlu0 %445
        %vm447 = vcmask 916480
        %v448 = vsel %vm447, %v442, %v444
        %v449 = vsel %vm447, %v444, %v446
        %v451 = vsel %vm355, %v440, 0
        %v453 = vsel %vm359, %v448, 0
        %v455 = vsel %vm359, %v449, 0
        %457 = vmatprep.subr.mxu0 %v455
        %458 = vmatpush1.msra.mxu0 %v453
        %459 = vmatprep.subr.mxu0 0.0
        %460 = vmatpush1.msra.mxu0 0.0
        %461 = vmatprep.subr.mxu0 0.0
        %462 = vmatpush1.msra.mxu0 0.0
        %463 = vmatprep.subr.mxu0 0.0
        %464 = vmatpush1.msra.mxu0 0.0
        %465 = vmatprep.subr.mxu0 0.0
        %466 = vmatpush1.msra.mxu0 0.0
        %467 = vmatprep.subr.mxu0 0.0
        %468 = vmatpush1.msra.mxu0 0.0
        %469 = vmatprep.subr.mxu0 0.0
        %470 = vmatpush1.msra.mxu0 0.0
        %471 = vmatprep.subr.mxu0 0.0
        %472 = vmatpush1.msra.mxu0 0.0
        %473 = vmatprep.subr.mxu0 0.0
        %474 = vmatpush1.msra.mxu0 0.0
        %475 = vmatprep.subr.mxu0 0.0
        %476 = vmatpush1.msra.mxu0 0.0
        %477 = vmatprep.subr.mxu0 0.0
        %478 = vmatpush1.msra.mxu0 0.0
        %479 = vmatprep.subr.mxu0 0.0
        %480 = vmatpush1.msra.mxu0 0.0
        %481 = vmatprep.subr.mxu0 0.0
        %482 = vmatpush1.msra.mxu0 0.0
        %483 = vmatprep.subr.mxu0 0.0
        %484 = vmatpush1.msra.mxu0 0.0
        %485 = vmatprep.subr.mxu0 0.0
        %486 = vmatpush1.msra.mxu0 0.0
        %487 = vmatprep.subr.mxu0 0.0
        %488 = vmatpush1.msra.mxu0 0.0
        %489 = vmatprep.subr.mxu0 0.0
        %490 = vmatpush1.msra.mxu0 0.0
        %491 = vmatprep.subr.mxu0 0.0
        %492 = vmatpush1.msra.mxu0 0.0
        %493 = vmatprep.subr.mxu0 0.0
        %494 = vmatpush1.msra.mxu0 0.0
        %495 = vmatprep.subr.mxu0 0.0
        %496 = vmatpush1.msra.mxu0 0.0
        %497 = vmatprep.subr.mxu0 0.0
        %498 = vmatpush1.msra.mxu0 0.0
        %499 = vmatprep.subr.mxu0 0.0
        %500 = vmatpush1.msra.mxu0 0.0
        %501 = vmatprep.subr.mxu0 0.0
        %502 = vmatpush1.msra.mxu0 0.0
        %503 = vmatprep.subr.mxu0 0.0
        %504 = vmatpush1.msra.mxu0 0.0
        %505 = vmatprep.subr.mxu0 0.0
        %506 = vmatpush1.msra.mxu0 0.0
        %507 = vmatprep.subr.mxu0 0.0
        %508 = vmatpush1.msra.mxu0 0.0
        %509 = vmatprep.subr.mxu0 0.0
        %510 = vmatpush1.msra.mxu0 0.0
        %511 = vmatprep.subr.mxu0 0.0
        %512 = vmatpush1.msra.mxu0 0.0
        %513 = vmatprep.subr.mxu0 0.0
        %514 = vmatpush1.msra.mxu0 0.0
        %515 = vmatprep.subr.mxu0 0.0
        %516 = vmatpush1.msra.mxu0 0.0
        %517 = vmatprep.subr.mxu0 0.0
        %518 = vmatpush1.msra.mxu0 0.0
        %519 = vmatprep.subr.mxu0 0.0
        %520 = vmatpush1.msra.mxu0 0.0
        %521 = vmatprep.mubr.f32.mxu0 0.0
        %522 = vmatmul.mubr.f32.gmra.mrb[0].mxu0 %v451
        %v523 = vpop.f32.mrb[0].mxu0
        %v524 = vadd.f32 0.0, %v523
        %v525 = vpop.f32.mrb[0].mxu0
        %v526 = vadd.f32 0.0, %v525
        %527 = vdwg.mxu0
        %v528 = vadd.f32 %v437, %v524
        %v529 = vadd.f32 %v438, %v526
        %v530 = vsel %vm323, 1, 0
        %v531 = vlaneseq
        %v532 = vshrl.u32 %v531, 7
        %v533 = vsub.s32 0, %v532
        %v534 = vrot.slane %v530, %v533
        %v535 = vlaneseq
        %v536 = vshrl.u32 %v535, 7
        %v537 = vsub.s32 1, %v536
        %v538 = vrot.slane %v530, %v537
        %vm539 = vcmp.eq.s32.totalorder %v534, 1
        %vm540 = vcmp.eq.s32.totalorder %v538, 1
        %541 = vrot.lane.b32.xlu0 %v316, 111
        %v542 = vpop.permute.xlu0 %541
        %543 = vrot.lane.b32.xlu0 %v319, 111
        %v544 = vpop.permute.xlu0 %543
        %545 = vrot.lane.b32.xlu0 %v317, 111
        %v546 = vpop.permute.xlu0 %545
        %vm547 = vcmask 908288
        %v548 = vsel %vm547, %v542, %v544
        %v549 = vsel %vm547, %v544, %v546
        %v552 = vsel %vm539, %v548, 0.0
        %v553 = vsel %vm540, %v549, 0.0
        %s554 = scalar_lea.vmem %s3, 16
        %v555 = vld [vmem:[%s554] sm:$0xff]
        %v557 = vsel %vm355, %v555, 0
        %v560 = vsel %vm359, %v552, 0
        %v563 = vsel %vm359, %v553, 0
        %565 = vmatprep.subr.mxu0 %v563
        %566 = vmatpush1.msra.mxu0 %v560
        %567 = vmatprep.subr.mxu0 0.0
        %568 = vmatpush1.msra.mxu0 0.0
        %569 = vmatprep.subr.mxu0 0.0
        %570 = vmatpush1.msra.mxu0 0.0
        %571 = vmatprep.subr.mxu0 0.0
        %572 = vmatpush1.msra.mxu0 0.0
        %573 = vmatprep.subr.mxu0 0.0
        %574 = vmatpush1.msra.mxu0 0.0
        %575 = vmatprep.subr.mxu0 0.0
        %576 = vmatpush1.msra.mxu0 0.0
        %577 = vmatprep.subr.mxu0 0.0
        %578 = vmatpush1.msra.mxu0 0.0
        %579 = vmatprep.subr.mxu0 0.0
        %580 = vmatpush1.msra.mxu0 0.0
        %581 = vmatprep.subr.mxu0 0.0
        %582 = vmatpush1.msra.mxu0 0.0
        %583 = vmatprep.subr.mxu0 0.0
        %584 = vmatpush1.msra.mxu0 0.0
        %585 = vmatprep.subr.mxu0 0.0
        %586 = vmatpush1.msra.mxu0 0.0
        %587 = vmatprep.subr.mxu0 0.0
        %588 = vmatpush1.msra.mxu0 0.0
        %589 = vmatprep.subr.mxu0 0.0
        %590 = vmatpush1.msra.mxu0 0.0
        %591 = vmatprep.subr.mxu0 0.0
        %592 = vmatpush1.msra.mxu0 0.0
        %593 = vmatprep.subr.mxu0 0.0
        %594 = vmatpush1.msra.mxu0 0.0
        %595 = vmatprep.subr.mxu0 0.0
        %596 = vmatpush1.msra.mxu0 0.0
        %597 = vmatprep.subr.mxu0 0.0
        %598 = vmatpush1.msra.mxu0 0.0
        %599 = vmatprep.subr.mxu0 0.0
        %600 = vmatpush1.msra.mxu0 0.0
        %601 = vmatprep.subr.mxu0 0.0
        %602 = vmatpush1.msra.mxu0 0.0
        %603 = vmatprep.subr.mxu0 0.0
        %604 = vmatpush1.msra.mxu0 0.0
        %605 = vmatprep.subr.mxu0 0.0
        %606 = vmatpush1.msra.mxu0 0.0
        %607 = vmatprep.subr.mxu0 0.0
        %608 = vmatpush1.msra.mxu0 0.0
        %609 = vmatprep.subr.mxu0 0.0
        %610 = vmatpush1.msra.mxu0 0.0
        %611 = vmatprep.subr.mxu0 0.0
        %612 = vmatpush1.msra.mxu0 0.0
        %613 = vmatprep.subr.mxu0 0.0
        %614 = vmatpush1.msra.mxu0 0.0
        %615 = vmatprep.subr.mxu0 0.0
        %616 = vmatpush1.msra.mxu0 0.0
        %617 = vmatprep.subr.mxu0 0.0
        %618 = vmatpush1.msra.mxu0 0.0
        %619 = vmatprep.subr.mxu0 0.0
        %620 = vmatpush1.msra.mxu0 0.0
        %621 = vmatprep.subr.mxu0 0.0
        %622 = vmatpush1.msra.mxu0 0.0
        %623 = vmatprep.subr.mxu0 0.0
        %624 = vmatpush1.msra.mxu0 0.0
        %625 = vmatprep.subr.mxu0 0.0
        %626 = vmatpush1.msra.mxu0 0.0
        %627 = vmatprep.subr.mxu0 0.0
        %628 = vmatpush1.msra.mxu0 0.0
        %629 = vmatprep.mubr.f32.mxu0 0.0
        %630 = vmatmul.mubr.f32.gmra.mrb[0].mxu0 %v557
        %v631 = vpop.f32.mrb[0].mxu0
        %v632 = vadd.f32 0.0, %v631
        %v633 = vpop.f32.mrb[0].mxu0
        %v634 = vadd.f32 0.0, %v633
        %635 = vdwg.mxu0
        %v636 = vadd.f32 %v528, %v632
        %v637 = vadd.f32 %v529, %v634
        %638 = vrot.lane.b32.xlu0 %v316, 97
        %v639 = vpop.permute.xlu0 %638
        %640 = vrot.lane.b32.xlu0 %v319, 97
        %v641 = vpop.permute.xlu0 %640
        %642 = vrot.lane.b32.xlu0 %v317, 97
        %v643 = vpop.permute.xlu0 %642
        %vm644 = vcmask 793600
        %v645 = vsel %vm644, %v639, %v641
        %v646 = vsel %vm644, %v641, %v643
        %v649 = vsel %vm339, %v645, 0.0
        %v650 = vsel %vm340, %v646, 0.0
        %s651 = scalar_lea.vmem %s3, 24
        %v652 = vld [vmem:[%s651] sm:$0xff]
        %v654 = vsel %vm355, %v652, 0
        %v657 = vsel %vm359, %v649, 0
        %v660 = vsel %vm359, %v650, 0
        %662 = vmatprep.subr.mxu0 %v660
        %663 = vmatpush1.msra.mxu0 %v657
        %664 = vmatprep.subr.mxu0 0.0
        %665 = vmatpush1.msra.mxu0 0.0
        %666 = vmatprep.subr.mxu0 0.0
        %667 = vmatpush1.msra.mxu0 0.0
        %668 = vmatprep.subr.mxu0 0.0
        %669 = vmatpush1.msra.mxu0 0.0
        %670 = vmatprep.subr.mxu0 0.0
        %671 = vmatpush1.msra.mxu0 0.0
        %672 = vmatprep.subr.mxu0 0.0
        %673 = vmatpush1.msra.mxu0 0.0
        %674 = vmatprep.subr.mxu0 0.0
        %675 = vmatpush1.msra.mxu0 0.0
        %676 = vmatprep.subr.mxu0 0.0
        %677 = vmatpush1.msra.mxu0 0.0
        %678 = vmatprep.subr.mxu0 0.0
        %679 = vmatpush1.msra.mxu0 0.0
        %680 = vmatprep.subr.mxu0 0.0
        %681 = vmatpush1.msra.mxu0 0.0
        %682 = vmatprep.subr.mxu0 0.0
        %683 = vmatpush1.msra.mxu0 0.0
        %684 = vmatprep.subr.mxu0 0.0
        %685 = vmatpush1.msra.mxu0 0.0
        %686 = vmatprep.subr.mxu0 0.0
        %687 = vmatpush1.msra.mxu0 0.0
        %688 = vmatprep.subr.mxu0 0.0
        %689 = vmatpush1.msra.mxu0 0.0
        %690 = vmatprep.subr.mxu0 0.0
        %691 = vmatpush1.msra.mxu0 0.0
        %692 = vmatprep.subr.mxu0 0.0
        %693 = vmatpush1.msra.mxu0 0.0
        %694 = vmatprep.subr.mxu0 0.0
        %695 = vmatpush1.msra.mxu0 0.0
        %696 = vmatprep.subr.mxu0 0.0
        %697 = vmatpush1.msra.mxu0 0.0
        %698 = vmatprep.subr.mxu0 0.0
        %699 = vmatpush1.msra.mxu0 0.0
        %700 = vmatprep.subr.mxu0 0.0
        %701 = vmatpush1.msra.mxu0 0.0
        %702 = vmatprep.subr.mxu0 0.0
        %703 = vmatpush1.msra.mxu0 0.0
        %704 = vmatprep.subr.mxu0 0.0
        %705 = vmatpush1.msra.mxu0 0.0
        %706 = vmatprep.subr.mxu0 0.0
        %707 = vmatpush1.msra.mxu0 0.0
        %708 = vmatprep.subr.mxu0 0.0
        %709 = vmatpush1.msra.mxu0 0.0
        %710 = vmatprep.subr.mxu0 0.0
        %711 = vmatpush1.msra.mxu0 0.0
        %712 = vmatprep.subr.mxu0 0.0
        %713 = vmatpush1.msra.mxu0 0.0
        %714 = vmatprep.subr.mxu0 0.0
        %715 = vmatpush1.msra.mxu0 0.0
        %716 = vmatprep.subr.mxu0 0.0
        %717 = vmatpush1.msra.mxu0 0.0
        %718 = vmatprep.subr.mxu0 0.0
        %719 = vmatpush1.msra.mxu0 0.0
        %720 = vmatprep.subr.mxu0 0.0
        %721 = vmatpush1.msra.mxu0 0.0
        %722 = vmatprep.subr.mxu0 0.0
        %723 = vmatpush1.msra.mxu0 0.0
        %724 = vmatprep.subr.mxu0 0.0
        %725 = vmatpush1.msra.mxu0 0.0
        %726 = vmatprep.mubr.f32.mxu0 0.0
        %727 = vmatmul.mubr.f32.gmra.mrb[0].mxu0 %v654
        %v728 = vpop.f32.mrb[0].mxu0
        %v729 = vadd.f32 0.0, %v728
        %v730 = vpop.f32.mrb[0].mxu0
        %v731 = vadd.f32 0.0, %v730
        %732 = vdwg.mxu0
        %v733 = vadd.f32 %v636, %v729
        %v734 = vadd.f32 %v637, %v731
        %s735 = scalar_lea.vmem %s3, 32
        %v736 = vld [vmem:[%s735] sm:$0xff]
        %737 = vrot.lane.b32.xlu0 %v316, 96
        %v738 = vpop.permute.xlu0 %737
        %739 = vrot.lane.b32.xlu0 %v319, 96
        %v740 = vpop.permute.xlu0 %739
        %741 = vrot.lane.b32.xlu0 %v317, 96
        %v742 = vpop.permute.xlu0 %741
        %vm743 = vcmask 785408
        %v744 = vsel %vm743, %v738, %v740
        %v745 = vsel %vm743, %v740, %v742
        %v747 = vsel %vm355, %v736, 0
        %v749 = vsel %vm359, %v744, 0
        %v751 = vsel %vm359, %v745, 0
        %753 = vmatprep.subr.mxu0 %v751
        %754 = vmatpush1.msra.mxu0 %v749
        %755 = vmatprep.subr.mxu0 0.0
        %756 = vmatpush1.msra.mxu0 0.0
        %757 = vmatprep.subr.mxu0 0.0
        %758 = vmatpush1.msra.mxu0 0.0
        %759 = vmatprep.subr.mxu0 0.0
        %760 = vmatpush1.msra.mxu0 0.0
        %761 = vmatprep.subr.mxu0 0.0
        %762 = vmatpush1.msra.mxu0 0.0
        %763 = vmatprep.subr.mxu0 0.0
        %764 = vmatpush1.msra.mxu0 0.0
        %765 = vmatprep.subr.mxu0 0.0
        %766 = vmatpush1.msra.mxu0 0.0
        %767 = vmatprep.subr.mxu0 0.0
        %768 = vmatpush1.msra.mxu0 0.0
        %769 = vmatprep.subr.mxu0 0.0
        %770 = vmatpush1.msra.mxu0 0.0
        %771 = vmatprep.subr.mxu0 0.0
        %772 = vmatpush1.msra.mxu0 0.0
        %773 = vmatprep.subr.mxu0 0.0
        %774 = vmatpush1.msra.mxu0 0.0
        %775 = vmatprep.subr.mxu0 0.0
        %776 = vmatpush1.msra.mxu0 0.0
        %777 = vmatprep.subr.mxu0 0.0
        %778 = vmatpush1.msra.mxu0 0.0
        %779 = vmatprep.subr.mxu0 0.0
        %780 = vmatpush1.msra.mxu0 0.0
        %781 = vmatprep.subr.mxu0 0.0
        %782 = vmatpush1.msra.mxu0 0.0
        %783 = vmatprep.subr.mxu0 0.0
        %784 = vmatpush1.msra.mxu0 0.0
        %785 = vmatprep.subr.mxu0 0.0
        %786 = vmatpush1.msra.mxu0 0.0
        %787 = vmatprep.subr.mxu0 0.0
        %788 = vmatpush1.msra.mxu0 0.0
        %789 = vmatprep.subr.mxu0 0.0
        %790 = vmatpush1.msra.mxu0 0.0
        %791 = vmatprep.subr.mxu0 0.0
        %792 = vmatpush1.msra.mxu0 0.0
        %793 = vmatprep.subr.mxu0 0.0
        %794 = vmatpush1.msra.mxu0 0.0
        %795 = vmatprep.subr.mxu0 0.0
        %796 = vmatpush1.msra.mxu0 0.0
        %797 = vmatprep.subr.mxu0 0.0
        %798 = vmatpush1.msra.mxu0 0.0
        %799 = vmatprep.subr.mxu0 0.0
        %800 = vmatpush1.msra.mxu0 0.0
        %801 = vmatprep.subr.mxu0 0.0
        %802 = vmatpush1.msra.mxu0 0.0
        %803 = vmatprep.subr.mxu0 0.0
        %804 = vmatpush1.msra.mxu0 0.0
        %805 = vmatprep.subr.mxu0 0.0
        %806 = vmatpush1.msra.mxu0 0.0
        %807 = vmatprep.subr.mxu0 0.0
        %808 = vmatpush1.msra.mxu0 0.0
        %809 = vmatprep.subr.mxu0 0.0
        %810 = vmatpush1.msra.mxu0 0.0
        %811 = vmatprep.subr.mxu0 0.0
        %812 = vmatpush1.msra.mxu0 0.0
        %813 = vmatprep.subr.mxu0 0.0
        %814 = vmatpush1.msra.mxu0 0.0
        %815 = vmatprep.subr.mxu0 0.0
        %816 = vmatpush1.msra.mxu0 0.0
        %817 = vmatprep.mubr.f32.mxu0 0.0
        %818 = vmatmul.mubr.f32.gmra.mrb[0].mxu0 %v747
        %v819 = vpop.f32.mrb[0].mxu0
        %v820 = vadd.f32 0.0, %v819
        %v821 = vpop.f32.mrb[0].mxu0
        %v822 = vadd.f32 0.0, %v821
        %823 = vdwg.mxu0
        %v824 = vadd.f32 %v733, %v820
        %v825 = vadd.f32 %v734, %v822
        %826 = vrot.lane.b32.xlu0 %v316, 95
        %v827 = vpop.permute.xlu0 %826
        %828 = vrot.lane.b32.xlu0 %v319, 95
        %v829 = vpop.permute.xlu0 %828
        %830 = vrot.lane.b32.xlu0 %v317, 95
        %v831 = vpop.permute.xlu0 %830
        %vm832 = vcmask 777216
        %v833 = vsel %vm832, %v827, %v829
        %v834 = vsel %vm832, %v829, %v831
        %v837 = vsel %vm539, %v833, 0.0
        %v838 = vsel %vm540, %v834, 0.0
        %s839 = scalar_lea.vmem %s3, 40
        %v840 = vld [vmem:[%s839] sm:$0xff]
        %v842 = vsel %vm355, %v840, 0
        %v845 = vsel %vm359, %v837, 0
        %v848 = vsel %vm359, %v838, 0
        %850 = vmatprep.subr.mxu0 %v848
        %851 = vmatpush1.msra.mxu0 %v845
        %852 = vmatprep.subr.mxu0 0.0
        %853 = vmatpush1.msra.mxu0 0.0
        %854 = vmatprep.subr.mxu0 0.0
        %855 = vmatpush1.msra.mxu0 0.0
        %856 = vmatprep.subr.mxu0 0.0
        %857 = vmatpush1.msra.mxu0 0.0
        %858 = vmatprep.subr.mxu0 0.0
        %859 = vmatpush1.msra.mxu0 0.0
        %860 = vmatprep.subr.mxu0 0.0
        %861 = vmatpush1.msra.mxu0 0.0
        %862 = vmatprep.subr.mxu0 0.0
        %863 = vmatpush1.msra.mxu0 0.0
        %864 = vmatprep.subr.mxu0 0.0
        %865 = vmatpush1.msra.mxu0 0.0
        %866 = vmatprep.subr.mxu0 0.0
        %867 = vmatpush1.msra.mxu0 0.0
        %868 = vmatprep.subr.mxu0 0.0
        %869 = vmatpush1.msra.mxu0 0.0
        %870 = vmatprep.subr.mxu0 0.0
        %871 = vmatpush1.msra.mxu0 0.0
        %872 = vmatprep.subr.mxu0 0.0
        %873 = vmatpush1.msra.mxu0 0.0
        %874 = vmatprep.subr.mxu0 0.0
        %875 = vmatpush1.msra.mxu0 0.0
        %876 = vmatprep.subr.mxu0 0.0
        %877 = vmatpush1.msra.mxu0 0.0
        %878 = vmatprep.subr.mxu0 0.0
        %879 = vmatpush1.msra.mxu0 0.0
        %880 = vmatprep.subr.mxu0 0.0
        %881 = vmatpush1.msra.mxu0 0.0
        %882 = vmatprep.subr.mxu0 0.0
        %883 = vmatpush1.msra.mxu0 0.0
        %884 = vmatprep.subr.mxu0 0.0
        %885 = vmatpush1.msra.mxu0 0.0
        %886 = vmatprep.subr.mxu0 0.0
        %887 = vmatpush1.msra.mxu0 0.0
        %888 = vmatprep.subr.mxu0 0.0
        %889 = vmatpush1.msra.mxu0 0.0
        %890 = vmatprep.subr.mxu0 0.0
        %891 = vmatpush1.msra.mxu0 0.0
        %892 = vmatprep.subr.mxu0 0.0
        %893 = vmatpush1.msra.mxu0 0.0
        %894 = vmatprep.subr.mxu0 0.0
        %895 = vmatpush1.msra.mxu0 0.0
        %896 = vmatprep.subr.mxu0 0.0
        %897 = vmatpush1.msra.mxu0 0.0
        %898 = vmatprep.subr.mxu0 0.0
        %899 = vmatpush1.msra.mxu0 0.0
        %900 = vmatprep.subr.mxu0 0.0
        %901 = vmatpush1.msra.mxu0 0.0
        %902 = vmatprep.subr.mxu0 0.0
        %903 = vmatpush1.msra.mxu0 0.0
        %904 = vmatprep.subr.mxu0 0.0
        %905 = vmatpush1.msra.mxu0 0.0
        %906 = vmatprep.subr.mxu0 0.0
        %907 = vmatpush1.msra.mxu0 0.0
        %908 = vmatprep.subr.mxu0 0.0
        %909 = vmatpush1.msra.mxu0 0.0
        %910 = vmatprep.subr.mxu0 0.0
        %911 = vmatpush1.msra.mxu0 0.0
        %912 = vmatprep.subr.mxu0 0.0
        %913 = vmatpush1.msra.mxu0 0.0
        %914 = vmatprep.mubr.f32.mxu0 0.0
        %915 = vmatmul.mubr.f32.gmra.mrb[0].mxu0 %v842
        %v916 = vpop.f32.mrb[0].mxu0
        %v917 = vadd.f32 0.0, %v916
        %v918 = vpop.f32.mrb[0].mxu0
        %v919 = vadd.f32 0.0, %v918
        %920 = vdwg.mxu0
        %v921 = vadd.f32 %v824, %v917
        %v922 = vadd.f32 %v825, %v919
        %923 = vrot.lane.b32.xlu0 %v316, 81
        %v924 = vpop.permute.xlu0 %923
        %925 = vrot.lane.b32.xlu0 %v319, 81
        %v926 = vpop.permute.xlu0 %925
        %927 = vrot.lane.b32.xlu0 %v317, 81
        %v928 = vpop.permute.xlu0 %927
        %vm929 = vcmask 662528
        %v930 = vsel %vm929, %v924, %v926
        %v931 = vsel %vm929, %v926, %v928
        %v934 = vsel %vm339, %v930, 0.0
        %v935 = vsel %vm340, %v931, 0.0
        %s936 = scalar_lea.vmem %s3, 48
        %v937 = vld [vmem:[%s936] sm:$0xff]
        %v939 = vsel %vm355, %v937, 0
        %v942 = vsel %vm359, %v934, 0
        %v945 = vsel %vm359, %v935, 0
        %947 = vmatprep.subr.mxu0 %v945
        %948 = vmatpush1.msra.mxu0 %v942
        %949 = vmatprep.subr.mxu0 0.0
        %950 = vmatpush1.msra.mxu0 0.0
        %951 = vmatprep.subr.mxu0 0.0
        %952 = vmatpush1.msra.mxu0 0.0
        %953 = vmatprep.subr.mxu0 0.0
        %954 = vmatpush1.msra.mxu0 0.0
        %955 = vmatprep.subr.mxu0 0.0
        %956 = vmatpush1.msra.mxu0 0.0
        %957 = vmatprep.subr.mxu0 0.0
        %958 = vmatpush1.msra.mxu0 0.0
        %959 = vmatprep.subr.mxu0 0.0
        %960 = vmatpush1.msra.mxu0 0.0
        %961 = vmatprep.subr.mxu0 0.0
        %962 = vmatpush1.msra.mxu0 0.0
        %963 = vmatprep.subr.mxu0 0.0
        %964 = vmatpush1.msra.mxu0 0.0
        %965 = vmatprep.subr.mxu0 0.0
        %966 = vmatpush1.msra.mxu0 0.0
        %967 = vmatprep.subr.mxu0 0.0
        %968 = vmatpush1.msra.mxu0 0.0
        %969 = vmatprep.subr.mxu0 0.0
        %970 = vmatpush1.msra.mxu0 0.0
        %971 = vmatprep.subr.mxu0 0.0
        %972 = vmatpush1.msra.mxu0 0.0
        %973 = vmatprep.subr.mxu0 0.0
        %974 = vmatpush1.msra.mxu0 0.0
        %975 = vmatprep.subr.mxu0 0.0
        %976 = vmatpush1.msra.mxu0 0.0
        %977 = vmatprep.subr.mxu0 0.0
        %978 = vmatpush1.msra.mxu0 0.0
        %979 = vmatprep.subr.mxu0 0.0
        %980 = vmatpush1.msra.mxu0 0.0
        %981 = vmatprep.subr.mxu0 0.0
        %982 = vmatpush1.msra.mxu0 0.0
        %983 = vmatprep.subr.mxu0 0.0
        %984 = vmatpush1.msra.mxu0 0.0
        %985 = vmatprep.subr.mxu0 0.0
        %986 = vmatpush1.msra.mxu0 0.0
        %987 = vmatprep.subr.mxu0 0.0
        %988 = vmatpush1.msra.mxu0 0.0
        %989 = vmatprep.subr.mxu0 0.0
        %990 = vmatpush1.msra.mxu0 0.0
        %991 = vmatprep.subr.mxu0 0.0
        %992 = vmatpush1.msra.mxu0 0.0
        %993 = vmatprep.subr.mxu0 0.0
        %994 = vmatpush1.msra.mxu0 0.0
        %995 = vmatprep.subr.mxu0 0.0
        %996 = vmatpush1.msra.mxu0 0.0
        %997 = vmatprep.subr.mxu0 0.0
        %998 = vmatpush1.msra.mxu0 0.0
        %999 = vmatprep.subr.mxu0 0.0
        %1000 = vmatpush1.msra.mxu0 0.0
        %1001 = vmatprep.subr.mxu0 0.0
        %1002 = vmatpush1.msra.mxu0 0.0
        %1003 = vmatprep.subr.mxu0 0.0
        %1004 = vmatpush1.msra.mxu0 0.0
        %1005 = vmatprep.subr.mxu0 0.0
        %1006 = vmatpush1.msra.mxu0 0.0
        %1007 = vmatprep.subr.mxu0 0.0
        %1008 = vmatpush1.msra.mxu0 0.0
        %1009 = vmatprep.subr.mxu0 0.0
        %1010 = vmatpush1.msra.mxu0 0.0
        %1011 = vmatprep.mubr.f32.mxu0 0.0
        %1012 = vmatmul.mubr.f32.gmra.mrb[0].mxu0 %v939
        %v1013 = vpop.f32.mrb[0].mxu0
        %v1014 = vadd.f32 0.0, %v1013
        %v1015 = vpop.f32.mrb[0].mxu0
        %v1016 = vadd.f32 0.0, %v1015
        %1017 = vdwg.mxu0
        %v1018 = vadd.f32 %v921, %v1014
        %v1019 = vadd.f32 %v922, %v1016
        %s1020 = scalar_lea.vmem %s3, 56
        %v1021 = vld [vmem:[%s1020] sm:$0xff]
        %1022 = vrot.lane.b32.xlu0 %v316, 80
        %v1023 = vpop.permute.xlu0 %1022
        %1024 = vrot.lane.b32.xlu0 %v319, 80
        %v1025 = vpop.permute.xlu0 %1024
        %1026 = vrot.lane.b32.xlu0 %v317, 80
        %v1027 = vpop.permute.xlu0 %1026
        %vm1028 = vcmask 654336
        %v1029 = vsel %vm1028, %v1023, %v1025
        %v1030 = vsel %vm1028, %v1025, %v1027
        %v1032 = vsel %vm355, %v1021, 0
        %v1034 = vsel %vm359, %v1029, 0
        %v1036 = vsel %vm359, %v1030, 0
        %1038 = vmatprep.subr.mxu0 %v1036
        %1039 = vmatpush1.msra.mxu0 %v1034
        %1040 = vmatprep.subr.mxu0 0.0
        %1041 = vmatpush1.msra.mxu0 0.0
        %1042 = vmatprep.subr.mxu0 0.0
        %1043 = vmatpush1.msra.mxu0 0.0
        %1044 = vmatprep.subr.mxu0 0.0
        %1045 = vmatpush1.msra.mxu0 0.0
        %1046 = vmatprep.subr.mxu0 0.0
        %1047 = vmatpush1.msra.mxu0 0.0
        %1048 = vmatprep.subr.mxu0 0.0
        %1049 = vmatpush1.msra.mxu0 0.0
        %1050 = vmatprep.subr.mxu0 0.0
        %1051 = vmatpush1.msra.mxu0 0.0
        %1052 = vmatprep.subr.mxu0 0.0
        %1053 = vmatpush1.msra.mxu0 0.0
        %1054 = vmatprep.subr.mxu0 0.0
        %1055 = vmatpush1.msra.mxu0 0.0
        %1056 = vmatprep.subr.mxu0 0.0
        %1057 = vmatpush1.msra.mxu0 0.0
        %1058 = vmatprep.subr.mxu0 0.0
        %1059 = vmatpush1.msra.mxu0 0.0
        %1060 = vmatprep.subr.mxu0 0.0
        %1061 = vmatpush1.msra.mxu0 0.0
        %1062 = vmatprep.subr.mxu0 0.0
        %1063 = vmatpush1.msra.mxu0 0.0
        %1064 = vmatprep.subr.mxu0 0.0
        %1065 = vmatpush1.msra.mxu0 0.0
        %1066 = vmatprep.subr.mxu0 0.0
        %1067 = vmatpush1.msra.mxu0 0.0
        %1068 = vmatprep.subr.mxu0 0.0
        %1069 = vmatpush1.msra.mxu0 0.0
        %1070 = vmatprep.subr.mxu0 0.0
        %1071 = vmatpush1.msra.mxu0 0.0
        %1072 = vmatprep.subr.mxu0 0.0
        %1073 = vmatpush1.msra.mxu0 0.0
        %1074 = vmatprep.subr.mxu0 0.0
        %1075 = vmatpush1.msra.mxu0 0.0
        %1076 = vmatprep.subr.mxu0 0.0
        %1077 = vmatpush1.msra.mxu0 0.0
        %1078 = vmatprep.subr.mxu0 0.0
        %1079 = vmatpush1.msra.mxu0 0.0
        %1080 = vmatprep.subr.mxu0 0.0
        %1081 = vmatpush1.msra.mxu0 0.0
        %1082 = vmatprep.subr.mxu0 0.0
        %1083 = vmatpush1.msra.mxu0 0.0
        %1084 = vmatprep.subr.mxu0 0.0
        %1085 = vmatpush1.msra.mxu0 0.0
        %1086 = vmatprep.subr.mxu0 0.0
        %1087 = vmatpush1.msra.mxu0 0.0
        %1088 = vmatprep.subr.mxu0 0.0
        %1089 = vmatpush1.msra.mxu0 0.0
        %1090 = vmatprep.subr.mxu0 0.0
        %1091 = vmatpush1.msra.mxu0 0.0
        %1092 = vmatprep.subr.mxu0 0.0
        %1093 = vmatpush1.msra.mxu0 0.0
        %1094 = vmatprep.subr.mxu0 0.0
        %1095 = vmatpush1.msra.mxu0 0.0
        %1096 = vmatprep.subr.mxu0 0.0
        %1097 = vmatpush1.msra.mxu0 0.0
        %1098 = vmatprep.subr.mxu0 0.0
        %1099 = vmatpush1.msra.mxu0 0.0
        %1100 = vmatprep.subr.mxu0 0.0
        %1101 = vmatpush1.msra.mxu0 0.0
        %1102 = vmatprep.mubr.f32.mxu0 0.0
        %1103 = vmatmul.mubr.f32.gmra.mrb[0].mxu0 %v1032
        %v1104 = vpop.f32.mrb[0].mxu0
        %v1105 = vadd.f32 0.0, %v1104
        %v1106 = vpop.f32.mrb[0].mxu0
        %v1107 = vadd.f32 0.0, %v1106
        %1108 = vdwg.mxu0
        %v1109 = vadd.f32 %v1018, %v1105
        %v1110 = vadd.f32 %v1019, %v1107
        %1111 = vrot.lane.b32.xlu0 %v316, 79
        %v1112 = vpop.permute.xlu0 %1111
        %1113 = vrot.lane.b32.xlu0 %v319, 79
        %v1114 = vpop.permute.xlu0 %1113
        %1115 = vrot.lane.b32.xlu0 %v317, 79
        %v1116 = vpop.permute.xlu0 %1115
        %vm1117 = vcmask 646144
        %v1118 = vsel %vm1117, %v1112, %v1114
        %v1119 = vsel %vm1117, %v1114, %v1116
        %v1122 = vsel %vm539, %v1118, 0.0
        %v1123 = vsel %vm540, %v1119, 0.0
        %s1124 = scalar_lea.vmem %s3, 64
        %v1125 = vld [vmem:[%s1124] sm:$0xff]
        %v1127 = vsel %vm355, %v1125, 0
        %v1130 = vsel %vm359, %v1122, 0
        %v1133 = vsel %vm359, %v1123, 0
        %1135 = vmatprep.subr.mxu0 %v1133
        %1136 = vmatpush1.msra.mxu0 %v1130
        %1137 = vmatprep.subr.mxu0 0.0
        %1138 = vmatpush1.msra.mxu0 0.0
        %1139 = vmatprep.subr.mxu0 0.0
        %1140 = vmatpush1.msra.mxu0 0.0
        %1141 = vmatprep.subr.mxu0 0.0
        %1142 = vmatpush1.msra.mxu0 0.0
        %1143 = vmatprep.subr.mxu0 0.0
        %1144 = vmatpush1.msra.mxu0 0.0
        %1145 = vmatprep.subr.mxu0 0.0
        %1146 = vmatpush1.msra.mxu0 0.0
        %1147 = vmatprep.subr.mxu0 0.0
        %1148 = vmatpush1.msra.mxu0 0.0
        %1149 = vmatprep.subr.mxu0 0.0
        %1150 = vmatpush1.msra.mxu0 0.0
        %1151 = vmatprep.subr.mxu0 0.0
        %1152 = vmatpush1.msra.mxu0 0.0
        %1153 = vmatprep.subr.mxu0 0.0
        %1154 = vmatpush1.msra.mxu0 0.0
        %1155 = vmatprep.subr.mxu0 0.0
        %1156 = vmatpush1.msra.mxu0 0.0
        %1157 = vmatprep.subr.mxu0 0.0
        %1158 = vmatpush1.msra.mxu0 0.0
        %1159 = vmatprep.subr.mxu0 0.0
        %1160 = vmatpush1.msra.mxu0 0.0
        %1161 = vmatprep.subr.mxu0 0.0
        %1162 = vmatpush1.msra.mxu0 0.0
        %1163 = vmatprep.subr.mxu0 0.0
        %1164 = vmatpush1.msra.mxu0 0.0
        %1165 = vmatprep.subr.mxu0 0.0
        %1166 = vmatpush1.msra.mxu0 0.0
        %1167 = vmatprep.subr.mxu0 0.0
        %1168 = vmatpush1.msra.mxu0 0.0
        %1169 = vmatprep.subr.mxu0 0.0
        %1170 = vmatpush1.msra.mxu0 0.0
        %1171 = vmatprep.subr.mxu0 0.0
        %1172 = vmatpush1.msra.mxu0 0.0
        %1173 = vmatprep.subr.mxu0 0.0
        %1174 = vmatpush1.msra.mxu0 0.0
        %1175 = vmatprep.subr.mxu0 0.0
        %1176 = vmatpush1.msra.mxu0 0.0
        %1177 = vmatprep.subr.mxu0 0.0
        %1178 = vmatpush1.msra.mxu0 0.0
        %1179 = vmatprep.subr.mxu0 0.0
        %1180 = vmatpush1.msra.mxu0 0.0
        %1181 = vmatprep.subr.mxu0 0.0
        %1182 = vmatpush1.msra.mxu0 0.0
        %1183 = vmatprep.subr.mxu0 0.0
        %1184 = vmatpush1.msra.mxu0 0.0
        %1185 = vmatprep.subr.mxu0 0.0
        %1186 = vmatpush1.msra.mxu0 0.0
        %1187 = vmatprep.subr.mxu0 0.0
        %1188 = vmatpush1.msra.mxu0 0.0
        %1189 = vmatprep.subr.mxu0 0.0
        %1190 = vmatpush1.msra.mxu0 0.0
        %1191 = vmatprep.subr.mxu0 0.0
        %1192 = vmatpush1.msra.mxu0 0.0
        %1193 = vmatprep.subr.mxu0 0.0
        %1194 = vmatpush1.msra.mxu0 0.0
        %1195 = vmatprep.subr.mxu0 0.0
        %1196 = vmatpush1.msra.mxu0 0.0
        %1197 = vmatprep.subr.mxu0 0.0
        %1198 = vmatpush1.msra.mxu0 0.0
        %1199 = vmatprep.mubr.f32.mxu0 0.0
        %1200 = vmatmul.mubr.f32.gmra.mrb[0].mxu0 %v1127
        %v1201 = vpop.f32.mrb[0].mxu0
        %v1202 = vadd.f32 0.0, %v1201
        %v1203 = vpop.f32.mrb[0].mxu0
        %v1204 = vadd.f32 0.0, %v1203
        %1205 = vdwg.mxu0
        %v1206 = vadd.f32 %v1109, %v1202
        %v1207 = vadd.f32 %v1110, %v1204
        %vm1208 = vcmp.gt.f32.partialorder %v1206, 0.0
        %vm1209 = vcmp.gt.f32.partialorder %v1207, 0.0
        %v1210 = vmul.f32 %v1206, 0.2
        %v1211 = vmul.f32 %v1207, 0.2
        %v1212 = vsel %vm1208, %v1206, %v1210
        %v1213 = vsel %vm1209, %v1207, %v1211
        %1214 = vst [vmem:[%s287] sm:$0xff] %v1212
        %1215 = vst [vmem:[%s287 + $0x8] sm:$0xff] %v1213
        %s1216 = sand.u32 %s167, 1
        %s1217 = scalar_lea.sflag [#allocation3], %s1216
        %s1218 = sand.u32 %s167, 1
        %s1219 = smul.addr %s1218, 16
        %s1220 = scalar_lea.vmem [#allocation2], %s1219
        // Predicated region
        $region41: #{tpu_custom_call.1} parent=39 // pred_check
          %p1221 = pneg %p177
        $region42: #{tpu_custom_call.1} parent=39 // pred_check_branch
          %1223 = sbr.rel (%p1221) target = $region44
        $region43: #{tpu_custom_call.1} parent=39 // pred_region
          %s1224 = smul.u32 2, %s24
          %s1226 = ssub.s32 256, 256
          %1227 = vsyncadd %s1217, %s1226
          %s1228 = smul.addr %s23, 2
          %s1229 = sadd.s32 %s1224, %s1228
          %s1230 = smul.addr %s1229, 128
          %s1231 = scalar_lea.hbm %s5, %s1230
          %s1233 = sshll.u32 %s1220, 4
          %s1234 = int_to_ptr.vmem [resolvable:$true] %s1233
          %1236 = dma.vmem_to_hbm [thread:$0]  %s1234, 256, %s1231, %s1217
        $region44: #{tpu_custom_call.1} parent=39 // pred_fallthru
          _
      $region40: #{tpu_custom_call.1} parent=5 // pred_fallthru
        _
      %p1237 = scmp.le.s32.totalorder 2, %s14
      // Predicated region
      $region45: #{tpu_custom_call.1} parent=5 // pred_check
        %p1238 = pneg %p1237
      $region46: #{tpu_custom_call.1} parent=5 // pred_check_branch
        %1240 = sbr.rel (%p1238) target = $region48
      $region47: #{tpu_custom_call.1} parent=5 // pred_region
        %s1241 = ssub.s32 %s14, 2
        // Predicated region
        $region49: #{tpu_custom_call.1} parent=47 // pred_check
          %p1242 = pneg %p183
        $region50: #{tpu_custom_call.1} parent=47 // pred_check_branch
          %1244 = sbr.rel (%p1242) target = $region52
        $region51: #{tpu_custom_call.1} parent=47 // pred_region
          %s1245 = sand.u32 %s168, 1
          %s1246 = scalar_lea.sflag [#allocation3], %s1245
          %s1247 = sand.u32 %s168, 1
          %s1248 = smul.addr %s1247, 16
          %s1249 = scalar_lea.vmem [#allocation2], %s1248
          %1250 = dma.done %s1246, 256
        $region52: #{tpu_custom_call.1} parent=47 // pred_fallthru
          _
      $region48: #{tpu_custom_call.1} parent=5 // pred_fallthru
        _
    $region6: #{tpu_custom_call.1} parent=1 // loop_footer
      %s18 = sadd.s32 1, %s14
    $region7: #{tpu_custom_call.1} parent=1 // loop_footer_branch
      %13 = sbr.rel target = $region3
    $region8: #{tpu_custom_call.1} parent=1 // loop_exit
      _
    %1251 = vsyncpa [#allocation3], 1
    %s1252 = scalar_lea.sflag [#allocation3], 1
    %1253 = vsyncpa %s1252, 1

</llo_original>
